<compile_context>
chip_gen: v5e
topology: v5e:2x2
jax: 0.10.0
libtpu: 0.0.40
codegen_flags: <defaults>
</compile_context>

<pallas_src>
import functools

import jax
import jax.numpy as jnp
from jax import lax
from jax.experimental import pallas as pl
from jax.experimental.pallas import tpu as pltpu

KSIZE = 7            # Conv2d(2, 1, kernel_size=(7, 1), padding='same', stride=1)
_PAD = KSIZE // 2
_STEP_OVERHEAD_BYTES = 512 * 1024      # ~0.35 us of HBM bandwidth per grid step


def _round_up(x, m):
    return ((x + m - 1) // m) * m


def _spatial_attn_kernel(w_ref, b_ref, x_ref, o_ref, st_ref, *, W, cc, slab):
    """One grid step: nb images.

    w_ref : SMEM (2, KSIZE) f32  (row 0 = avg-channel taps, row 1 = max-channel taps)
    b_ref : SMEM (1,)       f32
    x_ref : VMEM (nb, C, H*W)    lane-dense input images
    o_ref : VMEM (nb, H*W)       sigmoid(conv) output
    st_ref: VMEM (2*nb_r, HWp) f32, HWp = round_up(H*W, 128); rows [0, nb) hold
            the avg map, rows [nb_r, nb_r+nb) hold the max map (nb_r = round_up(nb, 8)).
    """
    Nb, C, HW = x_ref.shape
    H = HW // W
    two_nbr, HWp = st_ref.shape
    nb_r = two_nbr // 2
    nchunks = C // cc
    inv_c = 1.0 / C

    # ---- Phase 1: fused mean + max over channels, lane-slab tiled ----------
    if HWp > HW:                      # lane padding is read by the conv rolls
        st_ref[:, pl.ds(HW, HWp - HW)] = jnp.zeros((two_nbr, HWp - HW), jnp.float32)

    for s0 in range(0, HW, slab):
        sl = min(slab, HW - s0)
        first = x_ref[:, pl.ds(0, cc), pl.ds(s0, sl)]
        s_acc = jnp.sum(first.astype(jnp.float32), axis=1)        # (nb, sl) f32
        m_acc = jnp.max(first, axis=1)                            # (nb, sl) x-dtype

        if nchunks > 1:
            def body(i, carry):
                sa, ma = carry
                c0 = pl.multiple_of(i * cc, cc)                   # sublane-aligned chunk
                xc = x_ref[:, pl.ds(c0, cc), pl.ds(s0, sl)]
                return (sa + jnp.sum(xc.astype(jnp.float32), axis=1),
                        jnp.maximum(ma, jnp.max(xc, axis=1)))
            s_acc, m_acc = lax.fori_loop(1, nchunks, body, (s_acc, m_acc),
                                         unroll=min(4, nchunks - 1))

        st_ref[pl.ds(0, Nb), pl.ds(s0, sl)] = s_acc * inv_c
        st_ref[pl.ds(nb_r, Nb), pl.ds(s0, sl)] = m_acc.astype(jnp.float32)

    # ---- Phase 2: 7-tap 'same' conv along H on the flat, lane-padded axis ---
    # avg/max stacked on sublanes -> ONE pltpu.roll (XLU) per tap.
    stacked = st_ref[...]                                         # (2*nb_r, HWp) f32
    avg = stacked[:Nb]
    mx = stacked[nb_r:nb_r + Nb]
    acc = w_ref[0, _PAD] * avg + w_ref[1, _PAD] * mx + b_ref[0]   # centre tap (dh == 0)
    idx = lax.broadcasted_iota(jnp.int32, (Nb, HWp), 1)

    for kh in range(KSIZE):
        dh = kh - _PAD
        if dh == 0 or abs(dh) >= H:                 # centre done / tap fully outside
            continue
        d = dh * W                                  # row shift dh == lane shift dh*W
        rolled = pltpu.roll(stacked, shift=(-d) % HWp, axis=1)    # rolled[p] = src[(p+d)%HWp]
        a_s = rolled[:Nb]
        m_s = rolled[nb_r:nb_r + Nb]
        contrib = w_ref[0, kh] * a_s + w_ref[1, kh] * m_s
        # Single-compare boundary mask: in-image iff 0 <= p + d < HW.  Wrapped /
        # padding garbage only ever lands on masked (or later dropped) lanes.
        valid = (idx < HW - d) if d > 0 else (idx >= -d)
        acc = acc + jnp.where(valid, contrib, 0.0)

    o_ref[...] = jax.nn.sigmoid(acc[:, :HW]).astype(o_ref.dtype)


def _vmem_capacity_bytes():
    try:
        info = pltpu.get_tpu_info()
        cap = int(getattr(info, "vmem_capacity_bytes", 0) or 0)
        if cap > 0:
            return cap
    except Exception:
        pass
    return 64 << 20            # conservative fallback (v7x per-TensorCore VMEM)


def _pick_nb(n, per_image_bytes, target_bytes, align):
    """Images per grid step: a multiple of `align` (sublane-dense stores), block
    near `target_bytes`, with a mild preference for an even number of grid steps
    (balanced v7x TensorCores).  The last grid block may be partial."""
    if n <= align:
        return n
    cap = (min(n, target_bytes // max(per_image_bytes, 1)) // align) * align
    cap = max(align, cap)
    best_nb, best_cost = align, None
    for nb in range(align, cap + 1, align):
        g = -(-n // nb)
        cost = g * (nb * per_image_bytes + _STEP_OVERHEAD_BYTES)
        if g > 1 and g % 2 == 1:               # odd grid leaves one v7x core idle
            cost += (nb * per_image_bytes) // 2
        if best_cost is None or cost < best_cost:
            best_nb, best_cost = nb, cost
    return best_nb


def spatial_attention(x, w, b):
    """x: (N, C, H, W); w: (2, KSIZE); b: (1,).  Returns (N, 1, H, W) in x.dtype."""
    N, C, H, W = x.shape
    HW = H * W
    x_flat = x.reshape(N, C, HW)                        # free contiguous view
    itemsize = jnp.dtype(x.dtype).itemsize

    # Per-generation VMEM budget: v7x has 64 MiB/TC, v5e/v6e have 128 MiB.
    vmem_cap = _vmem_capacity_bytes()
    vmem_budget = min((vmem_cap * 3) // 4, 96 << 20)
    target_block = max(1 << 20, min(8 << 20, vmem_budget // 4))

    per_image = C * HW * itemsize
    align = max(8, 32 // itemsize)                      # sublane-dense output blocks
    nb = _pick_nb(N, per_image, target_block, align)
    nb_r = _round_up(nb, 8)
    grid_n = pl.cdiv(N, nb)

    if itemsize == 2 and C % 16 == 0:
        cc = 16                                         # packed 16-bit sublane pairs
    elif C % 8 == 0:
        cc = 8
    else:
        cc = C
    slab = min(512, HW)                                 # register-resident carries
    hw_pad = _round_up(HW, 128)                         # full-lane XLU rolls

    in_block = nb * per_image
    out_block = nb * HW * itemsize
    scratch = 2 * nb_r * hw_pad * 4
    vmem_limit = int(min(vmem_budget,
                         max(32 << 20,
                             2 * in_block + 2 * out_block + scratch + (8 << 20))))

    kernel = functools.partial(_spatial_attn_kernel, W=W, cc=cc, slab=slab)

    out = pl.pallas_call(
        kernel,
        out_shape=jax.ShapeDtypeStruct((N, HW), x.dtype),
        grid_spec=pltpu.PrefetchScalarGridSpec(
            num_scalar_prefetch=0,
            grid=(grid_n,),
            in_specs=[
                pl.BlockSpec(memory_space=pltpu.MemorySpace.SMEM),   # conv weights
                pl.BlockSpec(memory_space=pltpu.MemorySpace.SMEM),   # conv bias
                pl.BlockSpec((nb, C, HW), lambda g: (g, 0, 0)),      # nb images/step
            ],
            out_specs=pl.BlockSpec((nb, HW), lambda g: (g, 0)),
            scratch_shapes=[pltpu.VMEM((2 * nb_r, hw_pad), jnp.float32)],
        ),
        compiler_params=pltpu.CompilerParams(
            dimension_semantics=("parallel",),
            vmem_limit_bytes=vmem_limit),
    )(w.astype(jnp.float32), b.astype(jnp.float32), x_flat)

    return out.reshape(N, 1, H, W)


def reference_spatial_attention(x, w, b):
    # Pure-JAX reference matching torch semantics (NCHW, Conv2d(2,1,(7,1),'same')).
    avg = jnp.mean(x, axis=1)
    mx = jnp.max(x, axis=1)
    stacked = jnp.stack([avg, mx], axis=1)                  # (N, 2, H, W)
    kernel = w.reshape(1, 2, KSIZE, 1)                      # (O, I, kH, kW)
    out = lax.conv_general_dilated(
        stacked, kernel,
        window_strides=(1, 1),
        padding=[(_PAD, _PAD), (0, 0)],
        dimension_numbers=("NCHW", "OIHW", "NCHW"))
    return jax.nn.sigmoid(out + b.reshape(1, 1, 1, 1))


if __name__ == "__main__":
    key = jax.random.PRNGKey(0)

    # PyTorch Conv2d default init bound: 1/sqrt(fan_in), fan_in = 2*7*1.
    fan_in = 2 * KSIZE * 1
    bound = 1.0 / (fan_in ** 0.5)

    cases = [
        ((2, 4, 16, 16), jnp.float32),     # single channel-chunk, square map
        ((10, 32, 8, 4), jnp.float32),     # multi-chunk fori_loop + partial last grid block
        ((3, 32, 7, 5), jnp.bfloat16),     # bf16 path (cc=16), odd non-square map
        ((2, 8, 3, 4), jnp.float32),       # H < kernel_size (boundary-tap skipping)
    ]

    for i, (shape, dtype) in enumerate(cases):
        key, kx, kw, kb = jax.random.split(key, 4)
        N, C, H, W = shape
        x = jax.random.normal(kx, shape, dtype=jnp.float32).astype(dtype)
        w = jax.random.uniform(kw, (2, KSIZE), jnp.float32, -bound, bound)
        b = jax.random.uniform(kb, (1,), jnp.float32, -bound, bound)

        out = jax.block_until_ready(spatial_attention(x, w, b))
        ref = reference_spatial_attention(x.astype(jnp.float32), w, b)

        assert out.shape == (N, 1, H, W), f"case {i}: bad shape {out.shape}"
        tol = 2e-2 if dtype == jnp.bfloat16 else 1e-5
        assert jnp.allclose(out.astype(jnp.float32), ref, atol=tol, rtol=tol), \
            f"case {i}: mismatch vs reference"

    print("KERNEL_OK")
</pallas_src>

<mosaic_0001>
module attributes {stable_mosaic.version = 11 : i64} {
  func.func @_spatial_attn_kernel(%arg0: i32, %arg1: memref<2x7xf32, #tpu.memory_space<smem>>, %arg2: memref<1xf32, #tpu.memory_space<smem>>, %arg3: memref<2x4x256xf32, #tpu.memory_space<vmem>>, %arg4: memref<2x256xf32, #tpu.memory_space<vmem>>, %arg5: memref<16x256xf32, #tpu.memory_space<vmem>>) attributes {dimension_semantics = [#tpu.dimension_semantics<parallel>], iteration_bounds = array<i64: 1>, scalar_prefetch = 0 : i64, scratch_operands = 1 : i64, tpu.core_type = #tpu.core_type<tc>, window_params = [{transform_indices = @transform_0, window_bounds = array<i64: 2, 7>}, {transform_indices = @transform_1, window_bounds = array<i64: 1>}, {transform_indices = @transform_2, window_bounds = array<i64: 2, 4, 256>}, {transform_indices = @transform_3, window_bounds = array<i64: 2, 256>}]} {
    %c0 = arith.constant 0 : index
    %c0_0 = arith.constant 0 : index
    %c0_1 = arith.constant 0 : index
    %0 = vector.load %arg3[%c0, %c0_0, %c0_1] : memref<2x4x256xf32, #tpu.memory_space<vmem>>, vector<2x4x256xf32>
    %cst = arith.constant dense<0.000000e+00> : vector<2x256xf32>
    %1 = vector.multi_reduction <add>, %0, %cst [1] : vector<2x4x256xf32> to vector<2x256xf32>
    %cst_2 = arith.constant dense<0xFF800000> : vector<2x256xf32>
    %2 = vector.multi_reduction <maximumf>, %0, %cst_2 [1] : vector<2x4x256xf32> to vector<2x256xf32>
    %cst_3 = arith.constant 2.500000e-01 : f32
    %3 = vector.broadcast %cst_3 : f32 to vector<2x256xf32>
    %4 = arith.mulf %1, %3 : vector<2x256xf32>
    %c0_4 = arith.constant 0 : index
    %c0_5 = arith.constant 0 : index
    %5 = vector.load %arg5[%c0_4, %c0_5] : memref<16x256xf32, #tpu.memory_space<vmem>>, vector<2x256xf32>
    tpu.vector_store %arg5[%c0_4, %c0_5], %4 {strides = array<i32>} : memref<16x256xf32, #tpu.memory_space<vmem>>, vector<2x256xf32>,
    %c8 = arith.constant 8 : index
    %c0_6 = arith.constant 0 : index
    %6 = vector.load %arg5[%c8, %c0_6] : memref<16x256xf32, #tpu.memory_space<vmem>>, vector<2x256xf32>
    tpu.vector_store %arg5[%c8, %c0_6], %2 {strides = array<i32>} : memref<16x256xf32, #tpu.memory_space<vmem>>, vector<2x256xf32>,
    %c0_7 = arith.constant 0 : index
    %c0_8 = arith.constant 0 : index
    %7 = vector.load %arg5[%c0_7, %c0_8] : memref<16x256xf32, #tpu.memory_space<vmem>>, vector<16x256xf32>
    %8 = vector.extract_strided_slice %7 {offsets = [0, 0], sizes = [2, 256], strides = [1, 1]} : vector<16x256xf32> to vector<2x256xf32>
    %9 = vector.extract_strided_slice %7 {offsets = [8, 0], sizes = [2, 256], strides = [1, 1]} : vector<16x256xf32> to vector<2x256xf32>
    %c0_9 = arith.constant 0 : index
    %c3 = arith.constant 3 : index
    %10 = memref.load %arg1[%c0_9, %c3] : memref<2x7xf32, #tpu.memory_space<smem>>
    %11 = vector.broadcast %10 : f32 to vector<2x256xf32>
    %12 = arith.mulf %11, %8 : vector<2x256xf32>
    %c1 = arith.constant 1 : index
    %c3_10 = arith.constant 3 : index
    %13 = memref.load %arg1[%c1, %c3_10] : memref<2x7xf32, #tpu.memory_space<smem>>
    %14 = vector.broadcast %13 : f32 to vector<2x256xf32>
    %15 = arith.mulf %14, %9 : vector<2x256xf32>
    %16 = arith.addf %12, %15 : vector<2x256xf32>
    %c0_11 = arith.constant 0 : index
    %17 = memref.load %arg2[%c0_11] : memref<1xf32, #tpu.memory_space<smem>>
    %18 = vector.broadcast %17 : f32 to vector<2x256xf32>
    %19 = arith.addf %16, %18 : vector<2x256xf32>
    %20 = tpu.iota {dimensions = array<i32: 1>} : vector<2x256xi32>
    %c48_i32 = arith.constant 48 : i32
    %21 = tpu.dynamic_rotate %7 by %c48_i32 dim 1 : vector<16x256xf32>, i32 -> vector<16x256xf32>
    %22 = vector.extract_strided_slice %21 {offsets = [0, 0], sizes = [2, 256], strides = [1, 1]} : vector<16x256xf32> to vector<2x256xf32>
    %23 = vector.extract_strided_slice %21 {offsets = [8, 0], sizes = [2, 256], strides = [1, 1]} : vector<16x256xf32> to vector<2x256xf32>
    %c0_12 = arith.constant 0 : index
    %c0_13 = arith.constant 0 : index
    %24 = memref.load %arg1[%c0_12, %c0_13] : memref<2x7xf32, #tpu.memory_space<smem>>
    %25 = vector.broadcast %24 : f32 to vector<2x256xf32>
    %26 = arith.mulf %25, %22 : vector<2x256xf32>
    %c1_14 = arith.constant 1 : index
    %c0_15 = arith.constant 0 : index
    %27 = memref.load %arg1[%c1_14, %c0_15] : memref<2x7xf32, #tpu.memory_space<smem>>
    %28 = vector.broadcast %27 : f32 to vector<2x256xf32>
    %29 = arith.mulf %28, %23 : vector<2x256xf32>
    %30 = arith.addf %26, %29 : vector<2x256xf32>
    %c48_i32_16 = arith.constant 48 : i32
    %31 = vector.broadcast %c48_i32_16 : i32 to vector<2x256xi32>
    %32 = arith.cmpi sge, %20, %31 : vector<2x256xi32>
    %cst_17 = arith.constant 0.000000e+00 : f32
    %33 = vector.broadcast %cst_17 : f32 to vector<2x256xf32>
    %34 = arith.select %32, %30, %33 : vector<2x256xi1>, vector<2x256xf32>
    %35 = arith.addf %19, %34 : vector<2x256xf32>
    %c32_i32 = arith.constant 32 : i32
    %36 = tpu.dynamic_rotate %7 by %c32_i32 dim 1 : vector<16x256xf32>, i32 -> vector<16x256xf32>
    %37 = vector.extract_strided_slice %36 {offsets = [0, 0], sizes = [2, 256], strides = [1, 1]} : vector<16x256xf32> to vector<2x256xf32>
    %38 = vector.extract_strided_slice %36 {offsets = [8, 0], sizes = [2, 256], strides = [1, 1]} : vector<16x256xf32> to vector<2x256xf32>
    %c0_18 = arith.constant 0 : index
    %c1_19 = arith.constant 1 : index
    %39 = memref.load %arg1[%c0_18, %c1_19] : memref<2x7xf32, #tpu.memory_space<smem>>
    %40 = vector.broadcast %39 : f32 to vector<2x256xf32>
    %41 = arith.mulf %40, %37 : vector<2x256xf32>
    %c1_20 = arith.constant 1 : index
    %c1_21 = arith.constant 1 : index
    %42 = memref.load %arg1[%c1_20, %c1_21] : memref<2x7xf32, #tpu.memory_space<smem>>
    %43 = vector.broadcast %42 : f32 to vector<2x256xf32>
    %44 = arith.mulf %43, %38 : vector<2x256xf32>
    %45 = arith.addf %41, %44 : vector<2x256xf32>
    %c32_i32_22 = arith.constant 32 : i32
    %46 = vector.broadcast %c32_i32_22 : i32 to vector<2x256xi32>
    %47 = arith.cmpi sge, %20, %46 : vector<2x256xi32>
    %cst_23 = arith.constant 0.000000e+00 : f32
    %48 = vector.broadcast %cst_23 : f32 to vector<2x256xf32>
    %49 = arith.select %47, %45, %48 : vector<2x256xi1>, vector<2x256xf32>
    %50 = arith.addf %35, %49 : vector<2x256xf32>
    %c16_i32 = arith.constant 16 : i32
    %51 = tpu.dynamic_rotate %7 by %c16_i32 dim 1 : vector<16x256xf32>, i32 -> vector<16x256xf32>
    %52 = vector.extract_strided_slice %51 {offsets = [0, 0], sizes = [2, 256], strides = [1, 1]} : vector<16x256xf32> to vector<2x256xf32>
    %53 = vector.extract_strided_slice %51 {offsets = [8, 0], sizes = [2, 256], strides = [1, 1]} : vector<16x256xf32> to vector<2x256xf32>
    %c0_24 = arith.constant 0 : index
    %c2 = arith.constant 2 : index
    %54 = memref.load %arg1[%c0_24, %c2] : memref<2x7xf32, #tpu.memory_space<smem>>
    %55 = vector.broadcast %54 : f32 to vector<2x256xf32>
    %56 = arith.mulf %55, %52 : vector<2x256xf32>
    %c1_25 = arith.constant 1 : index
    %c2_26 = arith.constant 2 : index
    %57 = memref.load %arg1[%c1_25, %c2_26] : memref<2x7xf32, #tpu.memory_space<smem>>
    %58 = vector.broadcast %57 : f32 to vector<2x256xf32>
    %59 = arith.mulf %58, %53 : vector<2x256xf32>
    %60 = arith.addf %56, %59 : vector<2x256xf32>
    %c16_i32_27 = arith.constant 16 : i32
    %61 = vector.broadcast %c16_i32_27 : i32 to vector<2x256xi32>
    %62 = arith.cmpi sge, %20, %61 : vector<2x256xi32>
    %cst_28 = arith.constant 0.000000e+00 : f32
    %63 = vector.broadcast %cst_28 : f32 to vector<2x256xf32>
    %64 = arith.select %62, %60, %63 : vector<2x256xi1>, vector<2x256xf32>
    %65 = arith.addf %50, %64 : vector<2x256xf32>
    %c240_i32 = arith.constant 240 : i32
    %66 = tpu.dynamic_rotate %7 by %c240_i32 dim 1 : vector<16x256xf32>, i32 -> vector<16x256xf32>
    %67 = vector.extract_strided_slice %66 {offsets = [0, 0], sizes = [2, 256], strides = [1, 1]} : vector<16x256xf32> to vector<2x256xf32>
    %68 = vector.extract_strided_slice %66 {offsets = [8, 0], sizes = [2, 256], strides = [1, 1]} : vector<16x256xf32> to vector<2x256xf32>
    %c0_29 = arith.constant 0 : index
    %c4 = arith.constant 4 : index
    %69 = memref.load %arg1[%c0_29, %c4] : memref<2x7xf32, #tpu.memory_space<smem>>
    %70 = vector.broadcast %69 : f32 to vector<2x256xf32>
    %71 = arith.mulf %70, %67 : vector<2x256xf32>
    %c1_30 = arith.constant 1 : index
    %c4_31 = arith.constant 4 : index
    %72 = memref.load %arg1[%c1_30, %c4_31] : memref<2x7xf32, #tpu.memory_space<smem>>
    %73 = vector.broadcast %72 : f32 to vector<2x256xf32>
    %74 = arith.mulf %73, %68 : vector<2x256xf32>
    %75 = arith.addf %71, %74 : vector<2x256xf32>
    %c240_i32_32 = arith.constant 240 : i32
    %76 = vector.broadcast %c240_i32_32 : i32 to vector<2x256xi32>
    %77 = arith.cmpi slt, %20, %76 : vector<2x256xi32>
    %cst_33 = arith.constant 0.000000e+00 : f32
    %78 = vector.broadcast %cst_33 : f32 to vector<2x256xf32>
    %79 = arith.select %77, %75, %78 : vector<2x256xi1>, vector<2x256xf32>
    %80 = arith.addf %65, %79 : vector<2x256xf32>
    %c224_i32 = arith.constant 224 : i32
    %81 = tpu.dynamic_rotate %7 by %c224_i32 dim 1 : vector<16x256xf32>, i32 -> vector<16x256xf32>
    %82 = vector.extract_strided_slice %81 {offsets = [0, 0], sizes = [2, 256], strides = [1, 1]} : vector<16x256xf32> to vector<2x256xf32>
    %83 = vector.extract_strided_slice %81 {offsets = [8, 0], sizes = [2, 256], strides = [1, 1]} : vector<16x256xf32> to vector<2x256xf32>
    %c0_34 = arith.constant 0 : index
    %c5 = arith.constant 5 : index
    %84 = memref.load %arg1[%c0_34, %c5] : memref<2x7xf32, #tpu.memory_space<smem>>
    %85 = vector.broadcast %84 : f32 to vector<2x256xf32>
    %86 = arith.mulf %85, %82 : vector<2x256xf32>
    %c1_35 = arith.constant 1 : index
    %c5_36 = arith.constant 5 : index
    %87 = memref.load %arg1[%c1_35, %c5_36] : memref<2x7xf32, #tpu.memory_space<smem>>
    %88 = vector.broadcast %87 : f32 to vector<2x256xf32>
    %89 = arith.mulf %88, %83 : vector<2x256xf32>
    %90 = arith.addf %86, %89 : vector<2x256xf32>
    %c224_i32_37 = arith.constant 224 : i32
    %91 = vector.broadcast %c224_i32_37 : i32 to vector<2x256xi32>
    %92 = arith.cmpi slt, %20, %91 : vector<2x256xi32>
    %cst_38 = arith.constant 0.000000e+00 : f32
    %93 = vector.broadcast %cst_38 : f32 to vector<2x256xf32>
    %94 = arith.select %92, %90, %93 : vector<2x256xi1>, vector<2x256xf32>
    %95 = arith.addf %80, %94 : vector<2x256xf32>
    %c208_i32 = arith.constant 208 : i32
    %96 = tpu.dynamic_rotate %7 by %c208_i32 dim 1 : vector<16x256xf32>, i32 -> vector<16x256xf32>
    %97 = vector.extract_strided_slice %96 {offsets = [0, 0], sizes = [2, 256], strides = [1, 1]} : vector<16x256xf32> to vector<2x256xf32>
    %98 = vector.extract_strided_slice %96 {offsets = [8, 0], sizes = [2, 256], strides = [1, 1]} : vector<16x256xf32> to vector<2x256xf32>
    %c0_39 = arith.constant 0 : index
    %c6 = arith.constant 6 : index
    %99 = memref.load %arg1[%c0_39, %c6] : memref<2x7xf32, #tpu.memory_space<smem>>
    %100 = vector.broadcast %99 : f32 to vector<2x256xf32>
    %101 = arith.mulf %100, %97 : vector<2x256xf32>
    %c1_40 = arith.constant 1 : index
    %c6_41 = arith.constant 6 : index
    %102 = memref.load %arg1[%c1_40, %c6_41] : memref<2x7xf32, #tpu.memory_space<smem>>
    %103 = vector.broadcast %102 : f32 to vector<2x256xf32>
    %104 = arith.mulf %103, %98 : vector<2x256xf32>
    %105 = arith.addf %101, %104 : vector<2x256xf32>
    %c208_i32_42 = arith.constant 208 : i32
    %106 = vector.broadcast %c208_i32_42 : i32 to vector<2x256xi32>
    %107 = arith.cmpi slt, %20, %106 : vector<2x256xi32>
    %cst_43 = arith.constant 0.000000e+00 : f32
    %108 = vector.broadcast %cst_43 : f32 to vector<2x256xf32>
    %109 = arith.select %107, %105, %108 : vector<2x256xi1>, vector<2x256xf32>
    %110 = arith.addf %95, %109 : vector<2x256xf32>
    %111 = arith.negf %110 : vector<2x256xf32>
    %112 = math.exp %111 : vector<2x256xf32>
    %cst_44 = arith.constant 1.000000e+00 : f32
    %113 = vector.broadcast %cst_44 : f32 to vector<2x256xf32>
    %114 = arith.addf %113, %112 : vector<2x256xf32>
    %115 = arith.divf %113, %114 : vector<2x256xf32>
    %c0_45 = arith.constant 0 : index
    %c0_46 = arith.constant 0 : index
    %116 = vector.load %arg4[%c0_45, %c0_46] : memref<2x256xf32, #tpu.memory_space<vmem>>, vector<2x256xf32>
    tpu.vector_store %arg4[%c0_45, %c0_46], %115 {strides = array<i32>} : memref<2x256xf32, #tpu.memory_space<vmem>>, vector<2x256xf32>,
    return
  }
  func.func @transform_0(%arg0: i32) -> (i32, i32) {
    %c0_i32 = arith.constant 0 : i32
    %c0_i32_0 = arith.constant 0 : i32
    %c0_i32_1 = arith.constant 0 : i32
    return %c0_i32, %c0_i32_0 : i32, i32
  }
  func.func @transform_1(%arg0: i32) -> i32 {
    %c0_i32 = arith.constant 0 : i32
    %c0_i32_0 = arith.constant 0 : i32
    return %c0_i32 : i32
  }
  func.func @transform_2(%arg0: i32) -> (i32, i32, i32) {
    %c0_i32 = arith.constant 0 : i32
    %c0_i32_0 = arith.constant 0 : i32
    %c0_i32_1 = arith.constant 0 : i32
    return %arg0, %c0_i32, %c0_i32_0 : i32, i32, i32
  }
  func.func @transform_3(%arg0: i32) -> (i32, i32) {
    %c0_i32 = arith.constant 0 : i32
    %c0_i32_0 = arith.constant 0 : i32
    return %arg0, %c0_i32 : i32, i32
  }
}

</mosaic_0001>

<llo_original>
// kernel: tpu_custom_call.1
$region0: #{tpu_custom_call.1}
  #allocation0 [shape = 'u32[]', space=smem, size = 0x4, offset = 0x4, fixed_abs, tag = 'smem constant byte address 0x4 - core index']
  #allocation1 [shape = 'u32[72,128]{1,0:T(1,128)}', space=vmem, size = 0x9000, scoped, tag = 'internal scratch']
  #allocation2 [shape = 'f32[16,256]{1,0:T(8,128)}', space=vmem, size = 0x4000, scoped, tag = 'scratch operand']
  #allocation3 [shape = 'f32[1]{0:T(128)S(6)}', space=smem, size = 0x200, scoped, tag = 'scoped memory for tpu_custom_call.1']
  %s0 = inlined_call_operand.vmem [shape: f32[2,7], index: 0, kind: input, shape index: {}]
  %s1 = inlined_call_operand.<no memory space> [shape: f32[1], index: 1, kind: input, shape index: {}]
  %s2 = inlined_call_operand.hbm [shape: f32[2,4,256], index: 2, kind: input, shape index: {}]
  %s3 = inlined_call_operand.hbm [shape: f32[2,256], index: 3, kind: output, shape index: {}]
  %s4 = sld [smem:[#allocation0]]
  $region30: #{tpu_custom_call.1} parent=0
    _
  %s6 = ssub.s32 1, %s4
  %s7 = scalar_select 0, %s6, %s4
  %8 = sst [smem:[#allocation3]] %s1
  $region1: #{tpu_custom_call.1} parent=0
    #allocation4 [shape = 'u8[1024]{0}', space=smem, size = 0x400, scoped, tag = 'input window, operand 0, single buffered']
    #allocation5 [shape = 's32[1]{0}', space=sflag, size = 0x4, scoped, tag = 'scoped memory for tpu_custom_call.1']
    #allocation6 [shape = 's32[1]{0}', space=sflag, size = 0x4, scoped, tag = 'scoped memory for tpu_custom_call.1']
    #allocation7 [shape = 's32[1]{0}', space=sflag, size = 0x4, scoped, tag = 'scoped memory for tpu_custom_call.1']
    #allocation8 [shape = 'u8[8192]{0}', space=vmem, size = 0x2000, scoped, tag = 'input window, operand 2, single buffered']
    #allocation9 [shape = 'u8[2048]{0}', space=vmem, size = 0x800, scoped, tag = 'output window, operand 0, single buffered']
    %9 = vsyncpa [#allocation7], 0
    %10 = vsyncpa [#allocation5], 0
    %11 = vsyncpa [#allocation6], 0
    // Predicated region
    $region2: #{tpu_custom_call.1} parent=1 // pred_check
      _
    $region3: #{tpu_custom_call.1} parent=1 // pred_check_branch
      %13 = sbr.rel (0) target = $region5
    $region4: #{tpu_custom_call.1} parent=1 // pred_region
      %15 = vsyncadd [#allocation7], 0
      %s17 = sshll.u32 %s0, 4
      %s18 = int_to_ptr.vmem [resolvable:$true] %s17
      %20 = dma.vmem_to_smem %s18, 32, [#allocation4], [#allocation7]
    $region5: #{tpu_custom_call.1} parent=1 // pred_fallthru
      _
    // Predicated region
    $region6: #{tpu_custom_call.1} parent=1 // pred_check
      _
    $region7: #{tpu_custom_call.1} parent=1 // pred_check_branch
      %22 = sbr.rel (0) target = $region9
    $region8: #{tpu_custom_call.1} parent=1 // pred_region
      _
    $region9: #{tpu_custom_call.1} parent=1 // pred_fallthru
      _
    // Predicated region
    $region10: #{tpu_custom_call.1} parent=1 // pred_check
      _
    $region11: #{tpu_custom_call.1} parent=1 // pred_check_branch
      %24 = sbr.rel (0) target = $region13
    $region12: #{tpu_custom_call.1} parent=1 // pred_region
      %26 = vsyncadd [#allocation5], 0
      %s27 = sshll.u32 %s2, 4
      %s28 = int_to_ptr.hbm [resolvable:$true] %s27
      %s29 = sshll.u32 [#allocation8], 4
      %s30 = int_to_ptr.vmem [resolvable:$true] %s29
      %35 = dma.hbm_to_vmem [thread:$0]  %s28, 256, %s30, [#allocation5], 128, 128, 8
    $region13: #{tpu_custom_call.1} parent=1 // pred_fallthru
      _
    // Predicated region
    $region14: #{tpu_custom_call.1} parent=1 // pred_check
      _
    $region15: #{tpu_custom_call.1} parent=1 // pred_check_branch
      %37 = sbr.rel (0) target = $region17
    $region16: #{tpu_custom_call.1} parent=1 // pred_region
      %39 = dma.done [#allocation7], 32
    $region17: #{tpu_custom_call.1} parent=1 // pred_fallthru
      _
    // Predicated region
    $region18: #{tpu_custom_call.1} parent=1 // pred_check
      _
    $region19: #{tpu_custom_call.1} parent=1 // pred_check_branch
      %41 = sbr.rel (0) target = $region21
    $region20: #{tpu_custom_call.1} parent=1 // pred_region
      %43 = dma.done [#allocation5], 256
    $region21: #{tpu_custom_call.1} parent=1 // pred_fallthru
      _
    %44 = sfence
    %v45 = vld [vmem:[#allocation8] sm:$0xff]
    %v46 = vld [vmem:[#allocation8 + $0x8] sm:$0xff]
    %49 = vst [vmem:[#allocation1] ss:$2 sm:$0xff] %v45
    %v50 = vld.sshfl [vmem:[#allocation1] sm:$0xff pattern:$0x75316420]
    %v51 = vld.sshfl [vmem:[#allocation1 + $0x8] sm:$0xff pattern:$0x75316420]
    %s52 = scalar_lea.vmem [#allocation1], 16
    %53 = vst [vmem:[%s52] ss:$2 sm:$0xff] %v46
    %v54 = vld.sshfl [vmem:[#allocation1 + $0x10] sm:$0xff pattern:$0x75316420]
    %v55 = vld.sshfl [vmem:[#allocation1 + $0x18] sm:$0xff pattern:$0x75316420]
    %vm60 = vcmask 1043456
    %v61 = vsel %vm60, %v50, 0.0
    %v62 = vrot.slane %v61, 4
    %v63 = vadd.f32 %v61, %v62
    %v64 = vrot.slane %v63, 2
    %v65 = vadd.f32 %v63, %v64
    %v66 = vrot.slane %v65, 1
    %v67 = vadd.f32 %v65, %v66
    %v68 = vsel %vm60, %v51, 0.0
    %v69 = vrot.slane %v68, 4
    %v70 = vadd.f32 %v68, %v69
    %v71 = vrot.slane %v70, 2
    %v72 = vadd.f32 %v70, %v71
    %v73 = vrot.slane %v72, 1
    %v74 = vadd.f32 %v72, %v73
    %v75 = vsel %vm60, %v54, 0.0
    %v76 = vrot.slane %v75, 4
    %v77 = vadd.f32 %v75, %v76
    %v78 = vrot.slane %v77, 2
    %v79 = vadd.f32 %v77, %v78
    %v80 = vrot.slane %v79, 1
    %v81 = vadd.f32 %v79, %v80
    %v82 = vsel %vm60, %v55, 0.0
    %v83 = vrot.slane %v82, 4
    %v84 = vadd.f32 %v82, %v83
    %v85 = vrot.slane %v84, 2
    %v86 = vadd.f32 %v84, %v85
    %v87 = vrot.slane %v86, 1
    %v88 = vadd.f32 %v86, %v87
    %89 = vst [vmem:[#allocation1] ss:$2 sm:$0xff] %v45
    %v90 = vld.sshfl [vmem:[#allocation1] sm:$0xff pattern:$0x75316420]
    %v91 = vld.sshfl [vmem:[#allocation1 + $0x8] sm:$0xff pattern:$0x75316420]
    %s92 = scalar_lea.vmem [#allocation1], 16
    %93 = vst [vmem:[%s92] ss:$2 sm:$0xff] %v46
    %v94 = vld.sshfl [vmem:[#allocation1 + $0x10] sm:$0xff pattern:$0x75316420]
    %v95 = vld.sshfl [vmem:[#allocation1 + $0x18] sm:$0xff pattern:$0x75316420]
    %v100 = vsel %vm60, %v90, -inf
    %v101 = vrot.slane %v100, 4
    %v102 = vmax.f32 %v100, %v101
    %v103 = vrot.slane %v102, 2
    %v104 = vmax.f32 %v102, %v103
    %v105 = vrot.slane %v104, 1
    %v106 = vmax.f32 %v104, %v105
    %v107 = vsel %vm60, %v91, -inf
    %v108 = vrot.slane %v107, 4
    %v109 = vmax.f32 %v107, %v108
    %v110 = vrot.slane %v109, 2
    %v111 = vmax.f32 %v109, %v110
    %v112 = vrot.slane %v111, 1
    %v113 = vmax.f32 %v111, %v112
    %v114 = vsel %vm60, %v94, -inf
    %v115 = vrot.slane %v114, 4
    %v116 = vmax.f32 %v114, %v115
    %v117 = vrot.slane %v116, 2
    %v118 = vmax.f32 %v116, %v117
    %v119 = vrot.slane %v118, 1
    %v120 = vmax.f32 %v118, %v119
    %v121 = vsel %vm60, %v95, -inf
    %v122 = vrot.slane %v121, 4
    %v123 = vmax.f32 %v121, %v122
    %v124 = vrot.slane %v123, 2
    %v125 = vmax.f32 %v123, %v124
    %v126 = vrot.slane %v125, 1
    %v127 = vmax.f32 %v125, %v126
    %v128 = vmul.f32 %v67, 0.25
    %v129 = vmul.f32 %v74, 0.25
    %v130 = vmul.f32 %v81, 0.25
    %v131 = vmul.f32 %v88, 0.25
    %vm136 = vcmask 1041409
    %v137 = vsel %vm136, %v130, %v128
    %v138 = vsel %vm136, %v131, %v129
    %141 = vst [vmem:[#allocation2] sm:$0x3] %v137
    %142 = vst [vmem:[#allocation2 + $0x8] sm:$0x3] %v138
    %v147 = vsel %vm136, %v120, %v106
    %v148 = vsel %vm136, %v127, %v113
    %151 = vst [vmem:[#allocation2 + $0x10] sm:$0x3] %v147
    %152 = vst [vmem:[#allocation2 + $0x18] sm:$0x3] %v148
    %v153 = vld [vmem:[#allocation2] sm:$0xff]
    %v154 = vld [vmem:[#allocation2 + $0x8] sm:$0xff]
    %v155 = vld [vmem:[#allocation2 + $0x10] sm:$0xff]
    %v156 = vld [vmem:[#allocation2 + $0x18] sm:$0xff]
    %s157 = sld [smem:[#allocation4 + $0x3]]
    %v158 = vstv %s157
    %v159 = vmul.f32 %v158, %v153
    %v160 = vmul.f32 %v158, %v154
    %s161 = sld [smem:[#allocation4 + $0x83]]
    %v162 = vstv %s161
    %v163 = vmul.f32 %v162, %v155
    %v164 = vmul.f32 %v162, %v156
    %v165 = vadd.f32 %v159, %v163
    %v166 = vadd.f32 %v160, %v164
    %s167 = sld [smem:[#allocation3]]
    %v168 = vstv %s167
    %v169 = vadd.f32 %v165, %v168
    %v170 = vadd.f32 %v166, %v168
    %v171 = vlaneseq
    %v172 = vand.u32 %v171, 127
    %v173 = vadd.s32 %v172, 128
    %174 = vrot.lane.b32.xlu0 %v153, 48
    %v175 = vpop.permute.xlu0 %174
    %176 = vrot.lane.b32.xlu0 %v155, 48
    %v177 = vpop.permute.xlu0 %176
    %178 = vrot.lane.b32.xlu0 %v154, 48
    %v179 = vpop.permute.xlu0 %178
    %180 = vrot.lane.b32.xlu0 %v156, 48
    %v181 = vpop.permute.xlu0 %180
    %vm182 = vcmp.lt.s32.totalorder %v172, 48
    %v183 = vsel %vm182, %v175, %v179
    %v184 = vsel %vm182, %v177, %v181
    %v185 = vsel %vm182, %v179, %v175
    %v186 = vsel %vm182, %v181, %v177
    %s187 = sld [smem:[#allocation4]]
    %v188 = vstv %s187
    %v189 = vmul.f32 %v188, %v185
    %v190 = vmul.f32 %v188, %v183
    %s191 = sld [smem:[#allocation4 + $0x80]]
    %v192 = vstv %s191
    %v193 = vmul.f32 %v192, %v186
    %v194 = vmul.f32 %v192, %v184
    %v195 = vadd.f32 %v189, %v193
    %v196 = vadd.f32 %v190, %v194
    %vm197 = vcmp.ge.s32.totalorder %v172, 48
    %vm198 = vcmp.ge.s32.totalorder %v173, 48
    %v199 = vsel %vm197, %v195, 0.0
    %v200 = vsel %vm198, %v196, 0.0
    %v201 = vadd.f32 %v169, %v199
    %v202 = vadd.f32 %v170, %v200
    %203 = vrot.lane.b32.xlu0 %v153, 32
    %v204 = vpop.permute.xlu0 %203
    %205 = vrot.lane.b32.xlu0 %v155, 32
    %v206 = vpop.permute.xlu0 %205
    %207 = vrot.lane.b32.xlu0 %v154, 32
    %v208 = vpop.permute.xlu0 %207
    %209 = vrot.lane.b32.xlu0 %v156, 32
    %v210 = vpop.permute.xlu0 %209
    %vm211 = vcmp.lt.s32.totalorder %v172, 32
    %v212 = vsel %vm211, %v204, %v208
    %v213 = vsel %vm211, %v206, %v210
    %v214 = vsel %vm211, %v208, %v204
    %v215 = vsel %vm211, %v210, %v206
    %s216 = sld [smem:[#allocation4 + $0x1]]
    %v217 = vstv %s216
    %v218 = vmul.f32 %v217, %v214
    %v219 = vmul.f32 %v217, %v212
    %s220 = sld [smem:[#allocation4 + $0x81]]
    %v221 = vstv %s220
    %v222 = vmul.f32 %v221, %v215
    %v223 = vmul.f32 %v221, %v213
    %v224 = vadd.f32 %v218, %v222
    %v225 = vadd.f32 %v219, %v223
    %vm226 = vcmp.ge.s32.totalorder %v172, 32
    %vm227 = vcmp.ge.s32.totalorder %v173, 32
    %v228 = vsel %vm226, %v224, 0.0
    %v229 = vsel %vm227, %v225, 0.0
    %v230 = vadd.f32 %v201, %v228
    %v231 = vadd.f32 %v202, %v229
    %232 = vrot.lane.b32.xlu0 %v153, 16
    %v233 = vpop.permute.xlu0 %232
    %234 = vrot.lane.b32.xlu0 %v155, 16
    %v235 = vpop.permute.xlu0 %234
    %236 = vrot.lane.b32.xlu0 %v154, 16
    %v237 = vpop.permute.xlu0 %236
    %238 = vrot.lane.b32.xlu0 %v156, 16
    %v239 = vpop.permute.xlu0 %238
    %vm240 = vcmp.lt.s32.totalorder %v172, 16
    %v241 = vsel %vm240, %v233, %v237
    %v242 = vsel %vm240, %v235, %v239
    %v243 = vsel %vm240, %v237, %v233
    %v244 = vsel %vm240, %v239, %v235
    %s245 = sld [smem:[#allocation4 + $0x2]]
    %v246 = vstv %s245
    %v247 = vmul.f32 %v246, %v243
    %v248 = vmul.f32 %v246, %v241
    %s249 = sld [smem:[#allocation4 + $0x82]]
    %v250 = vstv %s249
    %v251 = vmul.f32 %v250, %v244
    %v252 = vmul.f32 %v250, %v242
    %v253 = vadd.f32 %v247, %v251
    %v254 = vadd.f32 %v248, %v252
    %vm255 = vcmp.ge.s32.totalorder %v172, 16
    %vm256 = vcmp.ge.s32.totalorder %v173, 16
    %v257 = vsel %vm255, %v253, 0.0
    %v258 = vsel %vm256, %v254, 0.0
    %v259 = vadd.f32 %v230, %v257
    %v260 = vadd.f32 %v231, %v258
    %261 = vrot.lane.b32.xlu0 %v153, 112
    %v262 = vpop.permute.xlu0 %261
    %263 = vrot.lane.b32.xlu0 %v155, 112
    %v264 = vpop.permute.xlu0 %263
    %265 = vrot.lane.b32.xlu0 %v154, 112
    %v266 = vpop.permute.xlu0 %265
    %267 = vrot.lane.b32.xlu0 %v156, 112
    %v268 = vpop.permute.xlu0 %267
    %vm269 = vcmp.lt.s32.totalorder %v172, 112
    %v270 = vsel %vm269, %v262, %v266
    %v271 = vsel %vm269, %v264, %v268
    %v272 = vsel %vm269, %v266, %v262
    %v273 = vsel %vm269, %v268, %v264
    %s274 = sld [smem:[#allocation4 + $0x4]]
    %v275 = vstv %s274
    %v276 = vmul.f32 %v275, %v270
    %v277 = vmul.f32 %v275, %v272
    %s278 = sld [smem:[#allocation4 + $0x84]]
    %v279 = vstv %s278
    %v280 = vmul.f32 %v279, %v271
    %v281 = vmul.f32 %v279, %v273
    %v282 = vadd.f32 %v276, %v280
    %v283 = vadd.f32 %v277, %v281
    %vm284 = vcmp.lt.s32.totalorder %v172, 240
    %vm285 = vcmp.lt.s32.totalorder %v173, 240
    %v286 = vsel %vm284, %v282, 0.0
    %v287 = vsel %vm285, %v283, 0.0
    %v288 = vadd.f32 %v259, %v286
    %v289 = vadd.f32 %v260, %v287
    %290 = vrot.lane.b32.xlu0 %v153, 96
    %v291 = vpop.permute.xlu0 %290
    %292 = vrot.lane.b32.xlu0 %v155, 96
    %v293 = vpop.permute.xlu0 %292
    %294 = vrot.lane.b32.xlu0 %v154, 96
    %v295 = vpop.permute.xlu0 %294
    %296 = vrot.lane.b32.xlu0 %v156, 96
    %v297 = vpop.permute.xlu0 %296
    %vm298 = vcmp.lt.s32.totalorder %v172, 96
    %v299 = vsel %vm298, %v291, %v295
    %v300 = vsel %vm298, %v293, %v297
    %v301 = vsel %vm298, %v295, %v291
    %v302 = vsel %vm298, %v297, %v293
    %s303 = sld [smem:[#allocation4 + $0x5]]
    %v304 = vstv %s303
    %v305 = vmul.f32 %v304, %v299
    %v306 = vmul.f32 %v304, %v301
    %s307 = sld [smem:[#allocation4 + $0x85]]
    %v308 = vstv %s307
    %v309 = vmul.f32 %v308, %v300
    %v310 = vmul.f32 %v308, %v302
    %v311 = vadd.f32 %v305, %v309
    %v312 = vadd.f32 %v306, %v310
    %vm313 = vcmp.lt.s32.totalorder %v172, 224
    %vm314 = vcmp.lt.s32.totalorder %v173, 224
    %v315 = vsel %vm313, %v311, 0.0
    %v316 = vsel %vm314, %v312, 0.0
    %v317 = vadd.f32 %v288, %v315
    %v318 = vadd.f32 %v289, %v316
    %319 = vrot.lane.b32.xlu0 %v153, 80
    %v320 = vpop.permute.xlu0 %319
    %321 = vrot.lane.b32.xlu0 %v155, 80
    %v322 = vpop.permute.xlu0 %321
    %323 = vrot.lane.b32.xlu0 %v154, 80
    %v324 = vpop.permute.xlu0 %323
    %325 = vrot.lane.b32.xlu0 %v156, 80
    %v326 = vpop.permute.xlu0 %325
    %vm327 = vcmp.lt.s32.totalorder %v172, 80
    %v328 = vsel %vm327, %v320, %v324
    %v329 = vsel %vm327, %v322, %v326
    %v330 = vsel %vm327, %v324, %v320
    %v331 = vsel %vm327, %v326, %v322
    %s332 = sld [smem:[#allocation4 + $0x6]]
    %v333 = vstv %s332
    %v334 = vmul.f32 %v333, %v328
    %v335 = vmul.f32 %v333, %v330
    %s336 = sld [smem:[#allocation4 + $0x86]]
    %v337 = vstv %s336
    %v338 = vmul.f32 %v337, %v329
    %v339 = vmul.f32 %v337, %v331
    %v340 = vadd.f32 %v334, %v338
    %v341 = vadd.f32 %v335, %v339
    %vm342 = vcmp.lt.s32.totalorder %v172, 208
    %vm343 = vcmp.lt.s32.totalorder %v173, 208
    %v344 = vsel %vm342, %v340, 0.0
    %v345 = vsel %vm343, %v341, 0.0
    %v346 = vadd.f32 %v317, %v344
    %v347 = vadd.f32 %v318, %v345
    %v348 = vxor.u32 %v346, 2147483648
    %v349 = vxor.u32 %v347, 2147483648
    %v350 = vmul.f32 %v348, 1.442695
    %v351 = vpow.pop %v350
    %v352 = vmul.f32 %v349, 1.442695
    %v353 = vpow.pop %v352
    %v354 = vadd.f32 %v351, 1.0
    %v355 = vadd.f32 %v353, 1.0
    %v356 = vrcp.pop %v354
    %v357 = vmul.f32 %v354, %v356
    %v358 = vsub.f32 1.0, %v357
    %v359 = vmul.f32 %v356, %v358
    %v360 = vadd.f32 %v356, %v359
    %vm361 = vweird.f32 %v354
    %vm362 = vweird.f32 %v356
    %vm363 = vmor %vm361, %vm362
    %v364 = vsel %vm363, %v356, %v360
    %v365 = vand.u32 2147483647, %v354
    %vm366 = vcmp.eq.f32.partialorder %v365, 8.507059e+37
    %v367 = vand.u32 %v354, 2147483648
    %v368 = vor.u32 1.1754944e-38, %v367
    %v369 = vsel %vm366, %v368, %v364
    %v370 = vmul.f32 1.0, %v369
    %v371 = vrcp.pop %v355
    %v372 = vmul.f32 %v355, %v371
    %v373 = vsub.f32 1.0, %v372
    %v374 = vmul.f32 %v371, %v373
    %v375 = vadd.f32 %v371, %v374
    %vm376 = vweird.f32 %v355
    %vm377 = vweird.f32 %v371
    %vm378 = vmor %vm376, %vm377
    %v379 = vsel %vm378, %v371, %v375
    %v380 = vand.u32 2147483647, %v355
    %vm381 = vcmp.eq.f32.partialorder %v380, 8.507059e+37
    %v382 = vand.u32 %v355, 2147483648
    %v383 = vor.u32 1.1754944e-38, %v382
    %v384 = vsel %vm381, %v383, %v379
    %v385 = vmul.f32 1.0, %v384
    %v388 = vrot.slane %v385, 6
    %vm389 = vcmask 1041408
    %v390 = vsel %vm389, %v370, %v388
    %392 = vst [vmem:[#allocation9] sm:$0xf] %v390
    // Predicated region
    $region22: #{tpu_custom_call.1} parent=1 // pred_check
      _
    $region23: #{tpu_custom_call.1} parent=1 // pred_check_branch
      %394 = sbr.rel (0) target = $region25
    $region24: #{tpu_custom_call.1} parent=1 // pred_region
      %396 = vsyncadd [#allocation6], 0
      %s398 = sshll.u32 [#allocation9], 4
      %s399 = int_to_ptr.vmem [resolvable:$true] %s398
      %s400 = sshll.u32 %s3, 4
      %s401 = int_to_ptr.hbm [resolvable:$true] %s400
      %403 = dma.vmem_to_hbm [thread:$0]  %s399, 64, %s401, [#allocation6]
    $region25: #{tpu_custom_call.1} parent=1 // pred_fallthru
      _
    // Predicated region
    $region26: #{tpu_custom_call.1} parent=1 // pred_check
      _
    $region27: #{tpu_custom_call.1} parent=1 // pred_check_branch
      %405 = sbr.rel (0) target = $region29
    $region28: #{tpu_custom_call.1} parent=1 // pred_region
      %407 = dma.done [#allocation6], 64
    $region29: #{tpu_custom_call.1} parent=1 // pred_fallthru
      _
    %408 = vsyncpa [#allocation5], 1
    %409 = vsyncpa [#allocation6], 1
    %410 = vsyncpa [#allocation7], 1

</llo_original>
